<compile_context>
chip_gen: v5e
topology: v5e:2x2
jax: 0.10.0
libtpu: 0.0.40
codegen_flags: <defaults>
</compile_context>

<pallas_src>
import jax
import jax.numpy as jnp
from jax.experimental import pallas as pl
from jax.experimental.pallas import tpu as pltpu


def _round_up(x, m):
    return ((x + m - 1) // m) * m


# ----------------------------------------------------------------------------
# Pallas kernel: fused transposed MLP (split first-layer weights) + log_softmax.
# All activations are [feature, edge_tile]  -> edges on the lane axis.
# ----------------------------------------------------------------------------
def _mlp_kernel(src_ref, dst_ref, w1a_ref, w1b_ref, b1_ref,
                w2_ref, b2_ref, w3_ref, b3_ref, o_ref):
    # layer 1 (transposed): h^T = W1a^T @ src^T + W1b^T @ dst^T + b1
    #   == (concat(src, dst) @ W1 + b1)^T, without ever forming the concat.
    h = (jnp.dot(w1a_ref[...], src_ref[...], preferred_element_type=jnp.float32)
         + jnp.dot(w1b_ref[...], dst_ref[...], preferred_element_type=jnp.float32)
         + b1_ref[...])                                   # [H1, tile] f32
    h = jnp.maximum(h, 0.0).astype(jnp.bfloat16)          # bf16 feed to next MXU

    # layer 2
    h = jnp.dot(w2_ref[...], h, preferred_element_type=jnp.float32) + b2_ref[...]
    h = jnp.maximum(h, 0.0).astype(jnp.bfloat16)          # [H2, tile]

    # output layer (no ReLU)
    logits = jnp.dot(w3_ref[...], h, preferred_element_type=jnp.float32) + b3_ref[...]

    # log_softmax over classes = sublane axis 0 (cheap C=8 sublane reduce),
    # per-column so ragged-tail lanes never contaminate valid lanes.
    m = jnp.max(logits, axis=0, keepdims=True)
    s = logits - m
    lse = jnp.log(jnp.sum(jnp.exp(s), axis=0, keepdims=True))
    o_ref[...] = (s - lse).astype(o_ref.dtype)             # lane-dense [C, tile] store

    # TODO(synk): dropout is a no-op here (eval mode / dropout=0); training-time
    # dropout would need pltpu.prng_random_bits + masking.


def _prepare_params(params, d):
    """Split/transpose weights for the edges-on-lanes kernel; cast to bf16."""
    w1, b1, w2, b2, w3, b3 = params
    w1a_t = jnp.asarray(w1[:d].T, jnp.bfloat16)            # [H1, D]  (src half)
    w1b_t = jnp.asarray(w1[d:].T, jnp.bfloat16)            # [H1, D]  (dst half)
    b1_c = jnp.asarray(jnp.reshape(b1, (-1, 1)), jnp.float32)   # [H1, 1]
    w2_t = jnp.asarray(w2.T, jnp.bfloat16)                  # [H2, H1]
    b2_c = jnp.asarray(jnp.reshape(b2, (-1, 1)), jnp.float32)   # [H2, 1]
    w3_t = jnp.asarray(w3.T, jnp.bfloat16)                  # [C, H2]
    b3_c = jnp.asarray(jnp.reshape(b3, (-1, 1)), jnp.float32)   # [C, 1]
    return w1a_t, w1b_t, b1_c, w2_t, b2_c, w3_t, b3_c


def mlp_log_softmax(src_t, dst_t, params_t, *, edge_tile=16384):
    """Fused MLP + log_softmax over transposed [D, E] bf16 src/dst streams.

    Returns log-probabilities as [C, E] (edges on lanes)."""
    w1a_t, w1b_t, b1_c, w2_t, b2_c, w3_t, b3_c = params_t
    D, E = src_t.shape
    H1 = w1a_t.shape[0]
    H2 = w2_t.shape[0]
    C = w3_t.shape[0]

    # Edge tile: multiple of 128 (lane-dense), capped near ceil(E/2) so the
    # grid has >= 2 steps when possible (keeps both v7x TensorCores busy), and
    # capped at edge_tile so big graphs still amortize the ~0.35us step cost.
    half = _round_up(max(1, -(-E // 2)), 128)
    tile = max(128, min(edge_tile, half))
    grid = (pl.cdiv(E, tile),)

    full = lambda i: (0, 0)  # weights / biases stay VMEM-resident (same block)

    out_t = pl.pallas_call(
        _mlp_kernel,
        out_shape=jax.ShapeDtypeStruct((C, E), jnp.float32),
        grid_spec=pltpu.PrefetchScalarGridSpec(
            num_scalar_prefetch=0,
            grid=grid,
            in_specs=[
                pl.BlockSpec((D, tile), lambda i: (0, i)),   # src^T tile (bf16)
                pl.BlockSpec((D, tile), lambda i: (0, i)),   # dst^T tile (bf16)
                pl.BlockSpec((H1, D), full),                 # W1a^T
                pl.BlockSpec((H1, D), full),                 # W1b^T
                pl.BlockSpec((H1, 1), full),                 # b1
                pl.BlockSpec((H2, H1), full),                # W2^T
                pl.BlockSpec((H2, 1), full),                 # b2
                pl.BlockSpec((C, H2), full),                 # W3^T
                pl.BlockSpec((C, 1), full),                  # b3
            ],
            out_specs=pl.BlockSpec((C, tile), lambda i: (0, i)),  # lane-dense
        ),
        compiler_params=pltpu.CompilerParams(
            dimension_semantics=("parallel",),     # megacore-shardable
            vmem_limit_bytes=32 * 1024 * 1024,     # explicit budget; blocks at
                                                   # tile=16384 use ~10 MiB
                                                   # double-buffered (bf16).
        ),
    )(src_t, dst_t, w1a_t, w1b_t, b1_c, w2_t, b2_c, w3_t, b3_c)

    return out_t


# ----------------------------------------------------------------------------
# Module-level forward: heterogeneous edge prediction
# ----------------------------------------------------------------------------
def hetero_edge_prediction_forward(encoder_output, edge_index_dict, params,
                                   *, edge_tile=16384):
    """Mirror of HeterogeneousEdgePredictionClassifier.forward.

    encoder_output: dict[node_type -> [num_nodes, D] array]
    edge_index_dict: dict[(src, rel, dst) -> [2, num_edges] int array]
    """
    node_types = list(encoder_output.keys())
    offsets = {}
    tables = []
    off = 0
    for nt in node_types:
        offsets[nt] = off
        tables.append(encoder_output[nt])
        off += encoder_output[nt].shape[0]
    table = jnp.concatenate(tables, axis=0)               # [total_nodes, D]
    D = table.shape[1]

    edge_types = list(edge_index_dict.keys())
    rows, cols, counts = [], [], []
    for et in edge_types:
        ei = edge_index_dict[et]
        rows.append(ei[0] + offsets[et[0]])
        cols.append(ei[1] + offsets[et[2]])
        counts.append(int(ei.shape[1]))

    w3 = params[4]
    C = w3.shape[1]

    # Degenerate case: no edges at all -> empty outputs per edge type.
    if sum(counts) == 0:
        return {et: jnp.zeros((0, C), jnp.float32) for et in edge_types}

    rows_all = jnp.concatenate(rows)                      # [E_total] int
    cols_all = jnp.concatenate(cols)

    # Transposed bf16 node table [D, total_nodes]; one lane-axis gather per
    # stream produces the [D, E] bf16 streams the kernel consumes directly
    # (no src||dst concat, no f32 [E, 2D] intermediate).
    # TODO(synk): fuse this gather into the kernel (VMEM-resident table +
    # scalar-prefetched indices) once in-kernel dynamic gather lowers reliably.
    table_t = jnp.asarray(table.T, jnp.bfloat16)
    src_t = jnp.take(table_t, rows_all, axis=1)           # [D, E_total] bf16
    dst_t = jnp.take(table_t, cols_all, axis=1)

    params_t = _prepare_params(params, D)
    out_t = mlp_log_softmax(src_t, dst_t, params_t, edge_tile=edge_tile)  # [C, E]

    decoder_output = {}
    start = 0
    for et, n in zip(edge_types, counts):
        decoder_output[et] = out_t[:, start:start + n].T  # [n, C]
        start += n
    return decoder_output


# Plain-JAX (f32) reference for correctness check
def _mlp_ref(x, params):
    w1, b1, w2, b2, w3, b3 = params
    h = jnp.maximum(x @ w1 + b1, 0.0)
    h = jnp.maximum(h @ w2 + b2, 0.0)
    logits = h @ w3 + b3
    return jax.nn.log_softmax(logits, axis=-1)


if __name__ == "__main__":
    key = jax.random.PRNGKey(0)

    # model hyper-parameters (matching the module's __init__ semantics)
    D = 16                       # per-node embedding dim from the encoder
    in_channels = 2 * D          # src || dst concat
    nodes_per_hidden_layer = [32, 16]
    output_size = 8

    # deterministic parameter init (synthetic; no checkpoint loading)
    ks = jax.random.split(key, 8)
    scale = 0.1
    w1 = scale * jax.random.normal(ks[0], (in_channels, nodes_per_hidden_layer[0]), jnp.float32)
    b1 = scale * jax.random.normal(ks[1], (1, nodes_per_hidden_layer[0]), jnp.float32)
    w2 = scale * jax.random.normal(ks[2], (nodes_per_hidden_layer[0], nodes_per_hidden_layer[1]), jnp.float32)
    b2 = scale * jax.random.normal(ks[3], (1, nodes_per_hidden_layer[1]), jnp.float32)
    w3 = scale * jax.random.normal(ks[4], (nodes_per_hidden_layer[1], output_size), jnp.float32)
    b3 = scale * jax.random.normal(ks[5], (1, output_size), jnp.float32)
    params = (w1, b1, w2, b2, w3, b3)

    # synthetic heterogeneous graph: two node types, two edge types
    n_user, n_item = 12, 10
    encoder_output = {
        "user": jax.random.normal(ks[6], (n_user, D), jnp.float32),
        "item": jax.random.normal(ks[7], (n_item, D), jnp.float32),
    }

    kr1, kr2, kc1, kc2 = jax.random.split(jax.random.PRNGKey(1), 4)
    e1, e2 = 20, 13     # ragged E_total = 33 exercises the partial lane tile
    edge_index_dict = {
        ("user", "buys", "item"): jnp.stack([
            jax.random.randint(kr1, (e1,), 0, n_user),
            jax.random.randint(kc1, (e1,), 0, n_item),
        ]),
        ("item", "rev_buys", "user"): jnp.stack([
            jax.random.randint(kr2, (e2,), 0, n_item),
            jax.random.randint(kc2, (e2,), 0, n_user),
        ]),
    }

    out = hetero_edge_prediction_forward(encoder_output, edge_index_dict, params)
    out = jax.tree_util.tree_map(jax.block_until_ready, out)

    # correctness check against plain-JAX f32 reference (kernel streams/weights
    # are bf16, so allow ~1e-2 tolerance on the log-probabilities)
    ok = True
    for edge_type, edge_index in edge_index_dict.items():
        row, col = edge_index[0], edge_index[1]
        x = jnp.concatenate(
            [encoder_output[edge_type[0]][row], encoder_output[edge_type[2]][col]],
            axis=-1,
        )
        ref = _mlp_ref(x, params)
        got = out[edge_type]
        if got.shape != ref.shape or not jnp.allclose(got, ref, atol=2e-2, rtol=2e-2):
            ok = False

    if ok:
        print("KERNEL_OK")
    else:
        print("KERNEL_MISMATCH")
</pallas_src>

<mosaic_0001>
module attributes {stable_mosaic.version = 11 : i64} {
  func.func @_mlp_kernel(%arg0: i32, %arg1: memref<16x128xbf16, #tpu.memory_space<vmem>>, %arg2: memref<16x128xbf16, #tpu.memory_space<vmem>>, %arg3: memref<32x16xbf16, #tpu.memory_space<vmem>>, %arg4: memref<32x16xbf16, #tpu.memory_space<vmem>>, %arg5: memref<32x1xf32, #tpu.memory_space<vmem>>, %arg6: memref<16x32xbf16, #tpu.memory_space<vmem>>, %arg7: memref<16x1xf32, #tpu.memory_space<vmem>>, %arg8: memref<8x16xbf16, #tpu.memory_space<vmem>>, %arg9: memref<8x1xf32, #tpu.memory_space<vmem>>, %arg10: memref<8x128xf32, #tpu.memory_space<vmem>>) attributes {dimension_semantics = [#tpu.dimension_semantics<parallel>], iteration_bounds = array<i64: 1>, scalar_prefetch = 0 : i64, scratch_operands = 0 : i64, tpu.core_type = #tpu.core_type<tc>, window_params = [{transform_indices = @transform_0, window_bounds = array<i64: 16, 128>}, {transform_indices = @transform_1, window_bounds = array<i64: 16, 128>}, {pipeline_mode = #tpu.pipeline_mode<synchronous>, transform_indices = @transform_2, window_bounds = array<i64: 32, 16>}, {pipeline_mode = #tpu.pipeline_mode<synchronous>, transform_indices = @transform_3, window_bounds = array<i64: 32, 16>}, {pipeline_mode = #tpu.pipeline_mode<synchronous>, transform_indices = @transform_4, window_bounds = array<i64: 32, 1>}, {pipeline_mode = #tpu.pipeline_mode<synchronous>, transform_indices = @transform_5, window_bounds = array<i64: 16, 32>}, {pipeline_mode = #tpu.pipeline_mode<synchronous>, transform_indices = @transform_6, window_bounds = array<i64: 16, 1>}, {pipeline_mode = #tpu.pipeline_mode<synchronous>, transform_indices = @transform_7, window_bounds = array<i64: 8, 16>}, {pipeline_mode = #tpu.pipeline_mode<synchronous>, transform_indices = @transform_8, window_bounds = array<i64: 8, 1>}, {transform_indices = @transform_9, window_bounds = array<i64: 8, 128>}]} {
    %c0 = arith.constant 0 : index
    %c0_0 = arith.constant 0 : index
    %0 = vector.load %arg3[%c0, %c0_0] : memref<32x16xbf16, #tpu.memory_space<vmem>>, vector<32x16xbf16>
    %c0_1 = arith.constant 0 : index
    %c0_2 = arith.constant 0 : index
    %1 = vector.load %arg1[%c0_1, %c0_2] : memref<16x128xbf16, #tpu.memory_space<vmem>>, vector<16x128xbf16>
    %cst = arith.constant dense<0.000000e+00> : vector<32x128xf32>
    %2 = tpu.matmul %0, %1, %cst {dimension_numbers = #tpu.dot_dimension_numbers<[1], [0], [0], [1], [0, 0, 1, 1], [], []>} : vector<32x16xbf16>, vector<16x128xbf16>, vector<32x128xf32> -> vector<32x128xf32>
    %c0_3 = arith.constant 0 : index
    %c0_4 = arith.constant 0 : index
    %3 = vector.load %arg4[%c0_3, %c0_4] : memref<32x16xbf16, #tpu.memory_space<vmem>>, vector<32x16xbf16>
    %c0_5 = arith.constant 0 : index
    %c0_6 = arith.constant 0 : index
    %4 = vector.load %arg2[%c0_5, %c0_6] : memref<16x128xbf16, #tpu.memory_space<vmem>>, vector<16x128xbf16>
    %cst_7 = arith.constant dense<0.000000e+00> : vector<32x128xf32>
    %5 = tpu.matmul %3, %4, %cst_7 {dimension_numbers = #tpu.dot_dimension_numbers<[1], [0], [0], [1], [0, 0, 1, 1], [], []>} : vector<32x16xbf16>, vector<16x128xbf16>, vector<32x128xf32> -> vector<32x128xf32>
    %6 = arith.addf %2, %5 : vector<32x128xf32>
    %c0_8 = arith.constant 0 : index
    %c0_9 = arith.constant 0 : index
    %7 = vector.load %arg5[%c0_8, %c0_9] : memref<32x1xf32, #tpu.memory_space<vmem>>, vector<32x1xf32>
    %8 = vector.broadcast %7 : vector<32x1xf32> to vector<32x128xf32>
    %9 = arith.addf %6, %8 : vector<32x128xf32>
    %cst_10 = arith.constant 0.000000e+00 : f32
    %10 = vector.broadcast %cst_10 : f32 to vector<32x128xf32>
    %11 = arith.maximumf %9, %10 : vector<32x128xf32>
    %12 = arith.truncf %11 : vector<32x128xf32> to vector<32x128xbf16>
    %c0_11 = arith.constant 0 : index
    %c0_12 = arith.constant 0 : index
    %13 = vector.load %arg6[%c0_11, %c0_12] : memref<16x32xbf16, #tpu.memory_space<vmem>>, vector<16x32xbf16>
    %cst_13 = arith.constant dense<0.000000e+00> : vector<16x128xf32>
    %14 = tpu.matmul %13, %12, %cst_13 {dimension_numbers = #tpu.dot_dimension_numbers<[1], [0], [0], [1], [0, 0, 1, 1], [], []>} : vector<16x32xbf16>, vector<32x128xbf16>, vector<16x128xf32> -> vector<16x128xf32>
    %c0_14 = arith.constant 0 : index
    %c0_15 = arith.constant 0 : index
    %15 = vector.load %arg7[%c0_14, %c0_15] : memref<16x1xf32, #tpu.memory_space<vmem>>, vector<16x1xf32>
    %16 = vector.broadcast %15 : vector<16x1xf32> to vector<16x128xf32>
    %17 = arith.addf %14, %16 : vector<16x128xf32>
    %cst_16 = arith.constant 0.000000e+00 : f32
    %18 = vector.broadcast %cst_16 : f32 to vector<16x128xf32>
    %19 = arith.maximumf %17, %18 : vector<16x128xf32>
    %20 = arith.truncf %19 : vector<16x128xf32> to vector<16x128xbf16>
    %c0_17 = arith.constant 0 : index
    %c0_18 = arith.constant 0 : index
    %21 = vector.load %arg8[%c0_17, %c0_18] : memref<8x16xbf16, #tpu.memory_space<vmem>>, vector<8x16xbf16>
    %cst_19 = arith.constant dense<0.000000e+00> : vector<8x128xf32>
    %22 = tpu.matmul %21, %20, %cst_19 {dimension_numbers = #tpu.dot_dimension_numbers<[1], [0], [0], [1], [0, 0, 1, 1], [], []>} : vector<8x16xbf16>, vector<16x128xbf16>, vector<8x128xf32> -> vector<8x128xf32>
    %c0_20 = arith.constant 0 : index
    %c0_21 = arith.constant 0 : index
    %23 = vector.load %arg9[%c0_20, %c0_21] : memref<8x1xf32, #tpu.memory_space<vmem>>, vector<8x1xf32>
    %24 = vector.broadcast %23 : vector<8x1xf32> to vector<8x128xf32>
    %25 = arith.addf %22, %24 : vector<8x128xf32>
    %cst_22 = arith.constant dense<0xFF800000> : vector<128xf32>
    %26 = vector.multi_reduction <maximumf>, %25, %cst_22 [0] : vector<8x128xf32> to vector<128xf32>
    %27 = vector.shape_cast %26 : vector<128xf32> to vector<1x128xf32>
    %28 = vector.broadcast %27 : vector<1x128xf32> to vector<8x128xf32>
    %29 = arith.subf %25, %28 : vector<8x128xf32>
    %30 = math.exp %29 : vector<8x128xf32>
    %cst_23 = arith.constant dense<0.000000e+00> : vector<128xf32>
    %31 = vector.multi_reduction <add>, %30, %cst_23 [0] : vector<8x128xf32> to vector<128xf32>
    %32 = vector.shape_cast %31 : vector<128xf32> to vector<1x128xf32>
    %33 = math.log %32 : vector<1x128xf32>
    %34 = vector.broadcast %33 : vector<1x128xf32> to vector<8x128xf32>
    %35 = arith.subf %29, %34 : vector<8x128xf32>
    %c0_24 = arith.constant 0 : index
    %c0_25 = arith.constant 0 : index
    %36 = vector.load %arg10[%c0_24, %c0_25] : memref<8x128xf32, #tpu.memory_space<vmem>>, vector<8x128xf32>
    tpu.vector_store %arg10[%c0_24, %c0_25], %35 {strides = array<i32>} : memref<8x128xf32, #tpu.memory_space<vmem>>, vector<8x128xf32>,
    return
  }
  func.func @transform_0(%arg0: i32) -> (i32, i32) {
    %c0_i32 = arith.constant 0 : i32
    %c0_i32_0 = arith.constant 0 : i32
    return %c0_i32, %arg0 : i32, i32
  }
  func.func @transform_1(%arg0: i32) -> (i32, i32) {
    %c0_i32 = arith.constant 0 : i32
    %c0_i32_0 = arith.constant 0 : i32
    return %c0_i32, %arg0 : i32, i32
  }
  func.func @transform_2(%arg0: i32) -> (i32, i32) {
    %c0_i32 = arith.constant 0 : i32
    %c0_i32_0 = arith.constant 0 : i32
    %c0_i32_1 = arith.constant 0 : i32
    return %c0_i32, %c0_i32_0 : i32, i32
  }
  func.func @transform_3(%arg0: i32) -> (i32, i32) {
    %c0_i32 = arith.constant 0 : i32
    %c0_i32_0 = arith.constant 0 : i32
    %c0_i32_1 = arith.constant 0 : i32
    return %c0_i32, %c0_i32_0 : i32, i32
  }
  func.func @transform_4(%arg0: i32) -> (i32, i32) {
    %c0_i32 = arith.constant 0 : i32
    %c0_i32_0 = arith.constant 0 : i32
    %c0_i32_1 = arith.constant 0 : i32
    return %c0_i32, %c0_i32_0 : i32, i32
  }
  func.func @transform_5(%arg0: i32) -> (i32, i32) {
    %c0_i32 = arith.constant 0 : i32
    %c0_i32_0 = arith.constant 0 : i32
    %c0_i32_1 = arith.constant 0 : i32
    return %c0_i32, %c0_i32_0 : i32, i32
  }
  func.func @transform_6(%arg0: i32) -> (i32, i32) {
    %c0_i32 = arith.constant 0 : i32
    %c0_i32_0 = arith.constant 0 : i32
    %c0_i32_1 = arith.constant 0 : i32
    return %c0_i32, %c0_i32_0 : i32, i32
  }
  func.func @transform_7(%arg0: i32) -> (i32, i32) {
    %c0_i32 = arith.constant 0 : i32
    %c0_i32_0 = arith.constant 0 : i32
    %c0_i32_1 = arith.constant 0 : i32
    return %c0_i32, %c0_i32_0 : i32, i32
  }
  func.func @transform_8(%arg0: i32) -> (i32, i32) {
    %c0_i32 = arith.constant 0 : i32
    %c0_i32_0 = arith.constant 0 : i32
    %c0_i32_1 = arith.constant 0 : i32
    return %c0_i32, %c0_i32_0 : i32, i32
  }
  func.func @transform_9(%arg0: i32) -> (i32, i32) {
    %c0_i32 = arith.constant 0 : i32
    %c0_i32_0 = arith.constant 0 : i32
    return %c0_i32, %arg0 : i32, i32
  }
}

</mosaic_0001>

<llo_original>
// kernel: tpu_custom_call.1
$region0: #{tpu_custom_call.1}
  #allocation0 [shape = 'u32[]', space=smem, size = 0x4, offset = 0x4, fixed_abs, tag = 'smem constant byte address 0x4 - core index']
  #allocation1 [shape = 'u32[72,128]{1,0:T(1,128)}', space=vmem, size = 0x9000, scoped, tag = 'internal scratch']
  %s0 = inlined_call_operand.vmem [shape: bf16[16,33], index: 0, kind: input, shape index: {}]
  %s1 = inlined_call_operand.vmem [shape: bf16[16,33], index: 1, kind: input, shape index: {}]
  %s2 = inlined_call_operand.vmem [shape: bf16[32,16], index: 2, kind: input, shape index: {}]
  %s3 = inlined_call_operand.vmem [shape: bf16[32,16], index: 3, kind: input, shape index: {}]
  %s4 = inlined_call_operand.vmem [shape: f32[32,1], index: 4, kind: input, shape index: {}]
  %s5 = inlined_call_operand.vmem [shape: bf16[16,32], index: 5, kind: input, shape index: {}]
  %s6 = inlined_call_operand.vmem [shape: f32[16,1], index: 6, kind: input, shape index: {}]
  %s7 = inlined_call_operand.vmem [shape: bf16[8,16], index: 7, kind: input, shape index: {}]
  %s8 = inlined_call_operand.vmem [shape: f32[8,1], index: 8, kind: input, shape index: {}]
  %s9 = inlined_call_operand.hbm [shape: f32[8,33], index: 9, kind: output, shape index: {}]
  %s10 = sld [smem:[#allocation0]]
  $region46: #{tpu_custom_call.1} parent=0
    _
  %s12 = ssub.s32 1, %s10
  %s13 = scalar_select 0, %s12, %s10
  $region1: #{tpu_custom_call.1} parent=0
    #allocation2 [shape = 'u8[4096]{0}', space=vmem, size = 0x1000, scoped, tag = 'output window, operand 0, single buffered']
    #allocation3 [shape = 's32[1]{0}', space=sflag, size = 0x4, scoped, tag = 'scoped memory for tpu_custom_call.1']
    %14 = vsyncpa [#allocation3], 0
    // Predicated region
    $region2: #{tpu_custom_call.1} parent=1 // pred_check
      _
    $region3: #{tpu_custom_call.1} parent=1 // pred_check_branch
      %16 = sbr.rel (0) target = $region5
    $region4: #{tpu_custom_call.1} parent=1 // pred_region
      _
    $region5: #{tpu_custom_call.1} parent=1 // pred_fallthru
      _
    // Predicated region
    $region6: #{tpu_custom_call.1} parent=1 // pred_check
      _
    $region7: #{tpu_custom_call.1} parent=1 // pred_check_branch
      %18 = sbr.rel (0) target = $region9
    $region8: #{tpu_custom_call.1} parent=1 // pred_region
      _
    $region9: #{tpu_custom_call.1} parent=1 // pred_fallthru
      _
    // Predicated region
    $region10: #{tpu_custom_call.1} parent=1 // pred_check
      _
    $region11: #{tpu_custom_call.1} parent=1 // pred_check_branch
      %20 = sbr.rel (0) target = $region13
    $region12: #{tpu_custom_call.1} parent=1 // pred_region
      _
    $region13: #{tpu_custom_call.1} parent=1 // pred_fallthru
      _
    // Predicated region
    $region14: #{tpu_custom_call.1} parent=1 // pred_check
      _
    $region15: #{tpu_custom_call.1} parent=1 // pred_check_branch
      %22 = sbr.rel (0) target = $region17
    $region16: #{tpu_custom_call.1} parent=1 // pred_region
      _
    $region17: #{tpu_custom_call.1} parent=1 // pred_fallthru
      _
    // Predicated region
    $region18: #{tpu_custom_call.1} parent=1 // pred_check
      _
    $region19: #{tpu_custom_call.1} parent=1 // pred_check_branch
      %24 = sbr.rel (0) target = $region21
    $region20: #{tpu_custom_call.1} parent=1 // pred_region
      _
    $region21: #{tpu_custom_call.1} parent=1 // pred_fallthru
      _
    // Predicated region
    $region22: #{tpu_custom_call.1} parent=1 // pred_check
      _
    $region23: #{tpu_custom_call.1} parent=1 // pred_check_branch
      %26 = sbr.rel (0) target = $region25
    $region24: #{tpu_custom_call.1} parent=1 // pred_region
      _
    $region25: #{tpu_custom_call.1} parent=1 // pred_fallthru
      _
    // Predicated region
    $region26: #{tpu_custom_call.1} parent=1 // pred_check
      _
    $region27: #{tpu_custom_call.1} parent=1 // pred_check_branch
      %28 = sbr.rel (0) target = $region29
    $region28: #{tpu_custom_call.1} parent=1 // pred_region
      _
    $region29: #{tpu_custom_call.1} parent=1 // pred_fallthru
      _
    // Predicated region
    $region30: #{tpu_custom_call.1} parent=1 // pred_check
      _
    $region31: #{tpu_custom_call.1} parent=1 // pred_check_branch
      %30 = sbr.rel (0) target = $region33
    $region32: #{tpu_custom_call.1} parent=1 // pred_region
      _
    $region33: #{tpu_custom_call.1} parent=1 // pred_fallthru
      _
    // Predicated region
    $region34: #{tpu_custom_call.1} parent=1 // pred_check
      _
    $region35: #{tpu_custom_call.1} parent=1 // pred_check_branch
      %32 = sbr.rel (0) target = $region37
    $region36: #{tpu_custom_call.1} parent=1 // pred_region
      _
    $region37: #{tpu_custom_call.1} parent=1 // pred_fallthru
      _
    %v34 = vld [vmem:[%s2] sm:$0xf]
    %v35 = vld [vmem:[%s2 + $0x4] sm:$0xf]
    %v36 = vld [vmem:[%s2 + $0x8] sm:$0xf]
    %v37 = vld [vmem:[%s2 + $0xc] sm:$0xf]
    %v38 = vld [vmem:[%s0] sm:$0xf]
    %v39 = vld [vmem:[%s0 + $0x4] sm:$0xf]
    %v40 = vld [vmem:[%s3] sm:$0xf]
    %v41 = vld [vmem:[%s3 + $0x4] sm:$0xf]
    %v42 = vld [vmem:[%s3 + $0x8] sm:$0xf]
    %v43 = vld [vmem:[%s3 + $0xc] sm:$0xf]
    %v44 = vld [vmem:[%s1] sm:$0xf]
    %v45 = vld [vmem:[%s1 + $0x4] sm:$0xf]
    %v50 = vunpack.c.l.b16 %v40
    %v51 = vunpack.c.l.b16 %v41
    %v52 = vunpack.c.l.b16 %v42
    %v53 = vunpack.c.l.b16 %v43
    %v54 = vpack.c.b16 %v51, %v50
    %v55 = vpack.c.b16 %v53, %v52
    %v58 = vunpack.c.l.b16 %v44
    %v59 = vunpack.c.l.b16 %v45
    %v60 = vpack.c.b16 %v59, %v58
    %vm62 = vcmask 130048
    %v64 = vsel %vm62, %v54, 0
    %v67 = vsel %vm62, %v55, 0
    %69 = vmatpush.bf16.msra.mxu0 0
    %70 = vmatpush.bf16.msra.mxu0 0
    %71 = vmatpush.bf16.msra.mxu0 0
    %72 = vmatpush.bf16.msra.mxu0 0
    %73 = vmatpush.bf16.msra.mxu0 0
    %74 = vmatpush.bf16.msra.mxu0 0
    %75 = vmatpush.bf16.msra.mxu0 0
    %76 = vmatpush.bf16.msra.mxu0 %v60
    %77 = vmatmul.bf16.gmra.mxu0 %v64
    %v78 = vpop.f32.mrf.mxu0
    %v79 = vadd.f32 0.0, %v78
    %v80 = vpop.f32.mrf.mxu0
    %v81 = vadd.f32 0.0, %v80
    %82 = vmatmul.bf16.gmra.mxu0 %v67
    %v83 = vpop.f32.mrf.mxu0
    %v84 = vadd.f32 0.0, %v83
    %v85 = vpop.f32.mrf.mxu0
    %v86 = vadd.f32 0.0, %v85
    %87 = vdwg.mxu0
    %v92 = vunpack.c.l.b16 %v34
    %v93 = vunpack.c.l.b16 %v35
    %v94 = vunpack.c.l.b16 %v36
    %v95 = vunpack.c.l.b16 %v37
    %v96 = vpack.c.b16 %v93, %v92
    %v97 = vpack.c.b16 %v95, %v94
    %v100 = vunpack.c.l.b16 %v38
    %v101 = vunpack.c.l.b16 %v39
    %v102 = vpack.c.b16 %v101, %v100
    %v105 = vsel %vm62, %v96, 0
    %v108 = vsel %vm62, %v97, 0
    %110 = vmatpush.bf16.msra.mxu0 0
    %111 = vmatpush.bf16.msra.mxu0 0
    %112 = vmatpush.bf16.msra.mxu0 0
    %113 = vmatpush.bf16.msra.mxu0 0
    %114 = vmatpush.bf16.msra.mxu0 0
    %115 = vmatpush.bf16.msra.mxu0 0
    %116 = vmatpush.bf16.msra.mxu0 0
    %117 = vmatpush.bf16.msra.mxu0 %v102
    %118 = vmatmul.bf16.gmra.mxu0 %v105
    %v119 = vpop.f32.mrf.mxu0
    %v120 = vadd.f32 %v79, %v119
    %v121 = vpop.f32.mrf.mxu0
    %v122 = vadd.f32 %v81, %v121
    %123 = vmatmul.bf16.gmra.mxu0 %v108
    %v124 = vpop.f32.mrf.mxu0
    %v125 = vadd.f32 %v84, %v124
    %v126 = vpop.f32.mrf.mxu0
    %v127 = vadd.f32 %v86, %v126
    %128 = vdwg.mxu0
    %v129 = vld [vmem:[%s4] sm:$0xff]
    %v130 = vld [vmem:[%s4 + $0x8] sm:$0xff]
    %v131 = vld [vmem:[%s4 + $0x10] sm:$0xff]
    %v132 = vld [vmem:[%s4 + $0x18] sm:$0xff]
    %134 = vset.pattern.permute.xlu0 0
    %135 = vperm.xlu0 %134, %v129
    %v136 = vpop.permute.xlu0 %135
    %139 = vset.pattern.permute.xlu0 0
    %140 = vperm.xlu0 %139, %v130
    %v141 = vpop.permute.xlu0 %140
    %144 = vset.pattern.permute.xlu0 0
    %145 = vperm.xlu0 %144, %v131
    %v146 = vpop.permute.xlu0 %145
    %149 = vset.pattern.permute.xlu0 0
    %150 = vperm.xlu0 %149, %v132
    %v151 = vpop.permute.xlu0 %150
    %v153 = vadd.f32 %v120, %v136
    %v154 = vadd.f32 %v122, %v141
    %v155 = vadd.f32 %v125, %v146
    %v156 = vadd.f32 %v127, %v151
    %v157 = vmax.f32 %v153, 0.0
    %v158 = vmax.f32 %v154, 0.0
    %v159 = vmax.f32 %v155, 0.0
    %v160 = vmax.f32 %v156, 0.0
    %v161 = vpack.c.bf16 %v158, %v157
    %v162 = vpack.c.bf16 %v160, %v159
    %v163 = vld [vmem:[%s5] sm:$0xf]
    %v164 = vld [vmem:[%s5 + $0x4] sm:$0xf]
    %v165 = vld [vmem:[%s6] sm:$0xff]
    %v166 = vld [vmem:[%s6 + $0x8] sm:$0xff]
    %168 = vset.pattern.permute.xlu0 0
    %169 = vperm.xlu0 %168, %v165
    %v170 = vpop.permute.xlu0 %169
    %173 = vset.pattern.permute.xlu0 0
    %174 = vperm.xlu0 %173, %v166
    %v175 = vpop.permute.xlu0 %174
    %v179 = vunpack.c.l.b16 %v163
    %v180 = vunpack.c.l.b16 %v164
    %v181 = vpack.c.b16 %v180, %v179
    %vm182 = vcmask 261120
    %v184 = vsel %vm182, %v181, 0
    %186 = vmatpush.bf16.msra.mxu0 0
    %187 = vmatpush.bf16.msra.mxu0 0
    %188 = vmatpush.bf16.msra.mxu0 0
    %189 = vmatpush.bf16.msra.mxu0 0
    %190 = vmatpush.bf16.msra.mxu0 0
    %191 = vmatpush.bf16.msra.mxu0 0
    %192 = vmatpush.bf16.msra.mxu0 %v162
    %193 = vmatpush.bf16.msra.mxu0 %v161
    %194 = vmatmul.bf16.gmra.mxu0 %v184
    %v195 = vpop.f32.mrf.mxu0
    %v196 = vadd.f32 %v170, %v195
    %v197 = vpop.f32.mrf.mxu0
    %v198 = vadd.f32 %v175, %v197
    %199 = vdwg.mxu0
    %v200 = vmax.f32 %v196, 0.0
    %v201 = vmax.f32 %v198, 0.0
    %v202 = vpack.c.bf16 %v201, %v200
    %v203 = vld [vmem:[%s7] sm:$0xf]
    %v204 = vld [vmem:[%s8] sm:$0xff]
    %206 = vset.pattern.permute.xlu0 0
    %207 = vperm.xlu0 %206, %v204
    %v208 = vpop.permute.xlu0 %207
    %v211 = vsel %vm62, %v203, 0
    %213 = vmatpush.bf16.msra.mxu0 0
    %214 = vmatpush.bf16.msra.mxu0 0
    %215 = vmatpush.bf16.msra.mxu0 0
    %216 = vmatpush.bf16.msra.mxu0 0
    %217 = vmatpush.bf16.msra.mxu0 0
    %218 = vmatpush.bf16.msra.mxu0 0
    %219 = vmatpush.bf16.msra.mxu0 0
    %220 = vmatpush.bf16.msra.mxu0 %v202
    %221 = vmatmul.bf16.gmra.mxu0 %v211
    %v222 = vpop.f32.mrf.mxu0
    %v223 = vadd.f32 %v208, %v222
    %v224 = vpop.f32.mrf.mxu0
    %225 = vdwg.mxu0
    %v226 = vrot.slane %v223, 4
    %v227 = vmax.f32 %v223, %v226
    %v228 = vrot.slane %v227, 2
    %v229 = vmax.f32 %v227, %v228
    %v230 = vrot.slane %v229, 1
    %v231 = vmax.f32 %v229, %v230
    %v232 = vsub.f32 %v223, %v231
    %v233 = vmul.f32 %v232, 1.442695
    %v234 = vpow.pop %v233
    %v235 = vrot.slane %v234, 4
    %v236 = vadd.f32 %v234, %v235
    %v237 = vrot.slane %v236, 2
    %v238 = vadd.f32 %v236, %v237
    %v239 = vrot.slane %v238, 1
    %v240 = vadd.f32 %v238, %v239
    %v241 = vlog2.pop %v240
    %v242 = vmul.f32 %v241, 0.6931472
    %v243 = vsub.f32 %v232, %v242
    %244 = vst [vmem:[#allocation2] sm:$0xff] %v243
    // Predicated region
    $region38: #{tpu_custom_call.1} parent=1 // pred_check
      _
    $region39: #{tpu_custom_call.1} parent=1 // pred_check_branch
      %246 = sbr.rel (0) target = $region41
    $region40: #{tpu_custom_call.1} parent=1 // pred_region
      %248 = vsyncadd [#allocation3], 0
      %s250 = sshll.u32 [#allocation2], 4
      %s251 = int_to_ptr.vmem [resolvable:$true] %s250
      %s252 = sshll.u32 %s9, 4
      %s253 = int_to_ptr.hbm [resolvable:$true] %s252
      %255 = dma.vmem_to_hbm [thread:$0]  %s251, 128, %s253, [#allocation3]
    $region41: #{tpu_custom_call.1} parent=1 // pred_fallthru
      _
    // Predicated region
    $region42: #{tpu_custom_call.1} parent=1 // pred_check
      _
    $region43: #{tpu_custom_call.1} parent=1 // pred_check_branch
      %257 = sbr.rel (0) target = $region45
    $region44: #{tpu_custom_call.1} parent=1 // pred_region
      %259 = dma.done [#allocation3], 128
    $region45: #{tpu_custom_call.1} parent=1 // pred_fallthru
      _
    %260 = vsyncpa [#allocation3], 1

</llo_original>
